<compile_context>
chip_gen: v6e
topology: v6e:2x2x1
jax: 0.10.0
libtpu: 0.0.40
codegen_flags: <defaults>
</compile_context>

<pallas_src>
import functools

import numpy as np
import jax
import jax.numpy as jnp
from jax import lax
from jax.experimental import pallas as pl
from jax.experimental.pallas import tpu as pltpu

EPS = 1e-5


def _round_up(v, m):
    return (v + m - 1) // m * m


def _make_tap_masks(H, W):
    """(9, H*W) float32 {0,1} border masks, tap index t = dy*3 + dx."""
    r = np.arange(H * W) // W
    c = np.arange(H * W) % W
    m = np.zeros((9, H * W), np.float32)
    for dy in range(3):
        for dx in range(3):
            ok = ((r + dy - 1 >= 0) & (r + dy - 1 < H) &
                  (c + dx - 1 >= 0) & (c + dx - 1 < W))
            m[dy * 3 + dx] = ok.astype(np.float32)
    return jnp.asarray(m)


def _prep_weight(w_oihw, cin_pad):
    """(Cout, Cin, 3, 3) -> (Cout, 9*cin_pad), columns tap-major
    (column = (dy*3+dx)*cin_pad + c) to match the in-kernel im2col rows."""
    Cout, Cin, _, _ = w_oihw.shape
    w = jnp.pad(w_oihw, ((0, 0), (0, cin_pad - Cin), (0, 0), (0, 0)))
    return jnp.transpose(w, (0, 2, 3, 1)).reshape(Cout, 9 * cin_pad)


# ------------------------- in-kernel conv core (MXU) -------------------------
def _conv3x3(a, w, masks, H, W):
    """a: (C, HW) f32 activation.  w: (Cout, 9*C).  masks: (9, HW) f32 {0,1}.
    Returns (Cout, HW) f32 via a single K = 9*C contraction over
    roll-generated taps (lane rotate on the XLU + border mask on the VPU)."""
    C, HW = a.shape
    taps = []
    for dy in range(3):
        for dx in range(3):
            s = (dy - 1) * W + (dx - 1)            # source-lane offset
            if s == 0:
                taps.append(a)                     # center tap: mask is all ones
            else:
                t = pltpu.roll(a, shift=(-s) % HW, axis=1)
                tap_i = dy * 3 + dx
                taps.append(t * masks[tap_i:tap_i + 1])
    patches = jnp.concatenate(taps, axis=0)        # (9*C, HW) im2col in VMEM
    return jnp.dot(w, patches, preferred_element_type=jnp.float32)


# ------------------------------ kernel bodies --------------------------------
def _conv_stats_kernel(x_ref, w_ref, m_ref, y_ref, s_ref, q_ref, *, H, W):
    # conv1 + per-image channel sums (stats fused into the conv epilogue).
    y = _conv3x3(x_ref[0], w_ref[...], m_ref[...], H, W)        # (Cout, HW)
    y_ref[...] = y[None].astype(y_ref.dtype)
    s_ref[...] = jnp.sum(y, axis=1, keepdims=True)[None]
    q_ref[...] = jnp.sum(y * y, axis=1, keepdims=True)[None]


def _bn_relu_conv_stats_kernel(y_in_ref, sc_ref, sh_ref, w_ref, m_ref,
                               y_ref, s_ref, q_ref, *, H, W):
    # BN+ReLU prologue (previous block) -> conv -> stats epilogue.
    a = jnp.maximum(y_in_ref[0] * sc_ref[...] + sh_ref[...], 0.0)
    y = _conv3x3(a, w_ref[...], m_ref[...], H, W)
    y_ref[...] = y[None].astype(y_ref.dtype)
    s_ref[...] = jnp.sum(y, axis=1, keepdims=True)[None]
    q_ref[...] = jnp.sum(y * y, axis=1, keepdims=True)[None]


def _bn_relu_kernel(y_ref, sc_ref, sh_ref, o_ref):
    o_ref[...] = jnp.maximum(y_ref[0] * sc_ref[...] + sh_ref[...],
                             0.0)[None].astype(o_ref.dtype)


# ------------------------------ pallas_call wrappers --------------------------
def _conv1_stats(x, w2d, masks, H, W):
    N, Cin_p, HW = x.shape
    Cout = w2d.shape[0]
    kern = functools.partial(_conv_stats_kernel, H=H, W=W)
    return pl.pallas_call(
        kern,
        out_shape=(jax.ShapeDtypeStruct((N, Cout, HW), jnp.float32),
                   jax.ShapeDtypeStruct((N, Cout, 1), jnp.float32),
                   jax.ShapeDtypeStruct((N, Cout, 1), jnp.float32)),
        grid=(N,),
        in_specs=[pl.BlockSpec((1, Cin_p, HW), lambda n: (n, 0, 0)),
                  pl.BlockSpec((Cout, 9 * Cin_p), lambda n: (0, 0)),
                  pl.BlockSpec((9, HW), lambda n: (0, 0))],
        out_specs=(pl.BlockSpec((1, Cout, HW), lambda n: (n, 0, 0)),
                   pl.BlockSpec((1, Cout, 1), lambda n: (n, 0, 0)),
                   pl.BlockSpec((1, Cout, 1), lambda n: (n, 0, 0))),
        compiler_params=pltpu.CompilerParams(dimension_semantics=("parallel",)),
    )(x, w2d, masks)


def _bn_conv_stats(y_in, scale, shift, w2d, masks, H, W):
    N, Cin, HW = y_in.shape
    Cout = w2d.shape[0]
    kern = functools.partial(_bn_relu_conv_stats_kernel, H=H, W=W)
    return pl.pallas_call(
        kern,
        out_shape=(jax.ShapeDtypeStruct((N, Cout, HW), jnp.float32),
                   jax.ShapeDtypeStruct((N, Cout, 1), jnp.float32),
                   jax.ShapeDtypeStruct((N, Cout, 1), jnp.float32)),
        grid=(N,),
        in_specs=[pl.BlockSpec((1, Cin, HW), lambda n: (n, 0, 0)),
                  pl.BlockSpec((Cin, 1), lambda n: (0, 0)),
                  pl.BlockSpec((Cin, 1), lambda n: (0, 0)),
                  pl.BlockSpec((Cout, 9 * Cin), lambda n: (0, 0)),
                  pl.BlockSpec((9, HW), lambda n: (0, 0))],
        out_specs=(pl.BlockSpec((1, Cout, HW), lambda n: (n, 0, 0)),
                   pl.BlockSpec((1, Cout, 1), lambda n: (n, 0, 0)),
                   pl.BlockSpec((1, Cout, 1), lambda n: (n, 0, 0))),
        compiler_params=pltpu.CompilerParams(dimension_semantics=("parallel",)),
    )(y_in, scale, shift, w2d, masks)


def _bn_relu(y, scale, shift):
    N, C, HW = y.shape
    return pl.pallas_call(
        _bn_relu_kernel,
        out_shape=jax.ShapeDtypeStruct((N, C, HW), jnp.float32),
        grid=(N,),
        in_specs=[pl.BlockSpec((1, C, HW), lambda n: (n, 0, 0)),
                  pl.BlockSpec((C, 1), lambda n: (0, 0)),
                  pl.BlockSpec((C, 1), lambda n: (0, 0))],
        out_specs=pl.BlockSpec((1, C, HW), lambda n: (n, 0, 0)),
        compiler_params=pltpu.CompilerParams(dimension_semantics=("parallel",)),
    )(y, scale, shift)


def _bn_scale_shift(s, q, gamma, beta, count):
    """Per-image partial sums (N, C, 1) -> BN scale/shift (C, 1) in plain JAX."""
    s = jnp.sum(s, axis=0)[:, 0]                    # (C,)
    q = jnp.sum(q, axis=0)[:, 0]
    mean = s / count
    # f32 E[x^2] - mean^2; fine at these magnitudes (two-pass would be safer
    # for extreme means — see review note).
    var = q / count - mean * mean                   # biased batch variance
    inv = lax.rsqrt(var + EPS)
    scale = gamma * inv
    shift = beta - mean * scale
    return scale.reshape(-1, 1), shift.reshape(-1, 1)


# ------------------------------- DoubleConv -----------------------------------
def double_conv(x, params):
    """x: (N, Cin, H, W) NCHW like PyTorch.  Returns (N, Cout, H, W)."""
    N, Cin, H, W = x.shape
    HW = H * W
    w1, b1, g1, be1, w2, b2, g2, be2 = params
    del b1, b2   # exactly cancelled by training-mode BN mean subtraction
    Cout = w1.shape[0]
    count = float(N * HW)

    Cin_p = _round_up(Cin, 8)                       # sublane-align the K taps
    x_flat = jnp.pad(x.reshape(N, Cin, HW), ((0, 0), (0, Cin_p - Cin), (0, 0)))
    masks = _make_tap_masks(H, W)
    w1_2d = _prep_weight(w1, Cin_p)
    w2_2d = _prep_weight(w2, Cout)                  # Cout=8 already 8-aligned

    y1, s1, q1 = _conv1_stats(x_flat, w1_2d, masks, H, W)
    sc1, sh1 = _bn_scale_shift(s1, q1, g1, be1, count)

    y2, s2, q2 = _bn_conv_stats(y1, sc1, sh1, w2_2d, masks, H, W)
    sc2, sh2 = _bn_scale_shift(s2, q2, g2, be2, count)

    out = _bn_relu(y2, sc2, sh2)
    return out.reshape(N, Cout, H, W)


# ------------------------------ pure-JAX reference ----------------------------
def _ref_block(x, w, b, gamma, beta):
    y = lax.conv_general_dilated(x, w, (1, 1), [(1, 1), (1, 1)],
                                 dimension_numbers=('NCHW', 'OIHW', 'NCHW'))
    y = y + b.reshape(1, -1, 1, 1)
    mean = jnp.mean(y, axis=(0, 2, 3), keepdims=True)
    var = jnp.mean((y - mean) ** 2, axis=(0, 2, 3), keepdims=True)
    y = (y - mean) * lax.rsqrt(var + EPS)
    y = y * gamma.reshape(1, -1, 1, 1) + beta.reshape(1, -1, 1, 1)
    return jnp.maximum(y, 0.0)


def ref_double_conv(x, params):
    w1, b1, g1, be1, w2, b2, g2, be2 = params
    return _ref_block(_ref_block(x, w1, b1, g1, be1), w2, b2, g2, be2)


if __name__ == "__main__":
    N, Cin, Cout, H, W = 2, 4, 8, 16, 16

    key = jax.random.PRNGKey(0)
    k_x, k_w1, k_b1, k_w2, k_b2 = jax.random.split(key, 5)

    x = jax.random.normal(k_x, (N, Cin, H, W), dtype=jnp.float32)

    # Deterministic synthetic parameters (shapes match nn.Conv2d / nn.BatchNorm2d).
    w1 = jax.random.normal(k_w1, (Cout, Cin, 3, 3), dtype=jnp.float32) * 0.1
    b1 = jax.random.normal(k_b1, (Cout,), dtype=jnp.float32) * 0.1
    g1 = jnp.ones((Cout,), jnp.float32)
    be1 = jnp.zeros((Cout,), jnp.float32)
    w2 = jax.random.normal(k_w2, (Cout, Cout, 3, 3), dtype=jnp.float32) * 0.1
    b2 = jax.random.normal(k_b2, (Cout,), dtype=jnp.float32) * 0.1
    g2 = jnp.ones((Cout,), jnp.float32)
    be2 = jnp.zeros((Cout,), jnp.float32)

    params = (w1, b1, g1, be1, w2, b2, g2, be2)

    out = double_conv(x, params)
    out = jax.block_until_ready(out)

    ref = jax.block_until_ready(ref_double_conv(x, params))
    assert out.shape == (N, Cout, H, W)
    assert jnp.allclose(out, ref, atol=1e-4, rtol=1e-4), (
        f"max abs diff {jnp.max(jnp.abs(out - ref))}")

    print("KERNEL_OK")
</pallas_src>

<mosaic_0001>
module attributes {stable_mosaic.version = 11 : i64} {
  func.func @_conv_stats_kernel(%arg0: i32, %arg1: memref<1x8x256xf32, #tpu.memory_space<vmem>>, %arg2: memref<8x72xf32, #tpu.memory_space<vmem>>, %arg3: memref<9x256xf32, #tpu.memory_space<vmem>>, %arg4: memref<1x8x256xf32, #tpu.memory_space<vmem>>, %arg5: memref<1x8x1xf32, #tpu.memory_space<vmem>>, %arg6: memref<1x8x1xf32, #tpu.memory_space<vmem>>) attributes {dimension_semantics = [#tpu.dimension_semantics<parallel>], iteration_bounds = array<i64: 2>, scalar_prefetch = 0 : i64, scratch_operands = 0 : i64, tpu.core_type = #tpu.core_type<tc>, window_params = [{transform_indices = @transform_0, window_bounds = array<i64: 1, 8, 256>}, {pipeline_mode = #tpu.pipeline_mode<synchronous>, transform_indices = @transform_1, window_bounds = array<i64: 8, 72>}, {pipeline_mode = #tpu.pipeline_mode<synchronous>, transform_indices = @transform_2, window_bounds = array<i64: 9, 256>}, {transform_indices = @transform_3, window_bounds = array<i64: 1, 8, 256>}, {transform_indices = @transform_4, window_bounds = array<i64: 1, 8, 1>}, {transform_indices = @transform_5, window_bounds = array<i64: 1, 8, 1>}]} {
    %c0 = arith.constant 0 : index
    %c0_0 = arith.constant 0 : index
    %c0_1 = arith.constant 0 : index
    %0 = vector.load %arg1[%c0, %c0_0, %c0_1] : memref<1x8x256xf32, #tpu.memory_space<vmem>>, vector<1x8x256xf32>
    %1 = vector.shape_cast %0 : vector<1x8x256xf32> to vector<8x256xf32>
    %c0_2 = arith.constant 0 : index
    %c0_3 = arith.constant 0 : index
    %2 = vector.load %arg2[%c0_2, %c0_3] : memref<8x72xf32, #tpu.memory_space<vmem>>, vector<8x72xf32>
    %c0_4 = arith.constant 0 : index
    %c0_5 = arith.constant 0 : index
    %3 = vector.load %arg3[%c0_4, %c0_5] : memref<9x256xf32, #tpu.memory_space<vmem>>, vector<9x256xf32>
    %c17_i32 = arith.constant 17 : i32
    %4 = tpu.dynamic_rotate %1 by %c17_i32 dim 1 : vector<8x256xf32>, i32 -> vector<8x256xf32>
    %5 = vector.extract_strided_slice %3 {offsets = [0, 0], sizes = [1, 256], strides = [1, 1]} : vector<9x256xf32> to vector<1x256xf32>
    %6 = vector.broadcast %5 : vector<1x256xf32> to vector<8x256xf32>
    %7 = arith.mulf %4, %6 : vector<8x256xf32>
    %c16_i32 = arith.constant 16 : i32
    %8 = tpu.dynamic_rotate %1 by %c16_i32 dim 1 : vector<8x256xf32>, i32 -> vector<8x256xf32>
    %9 = vector.extract_strided_slice %3 {offsets = [1, 0], sizes = [1, 256], strides = [1, 1]} : vector<9x256xf32> to vector<1x256xf32>
    %10 = vector.broadcast %9 : vector<1x256xf32> to vector<8x256xf32>
    %11 = arith.mulf %8, %10 : vector<8x256xf32>
    %c15_i32 = arith.constant 15 : i32
    %12 = tpu.dynamic_rotate %1 by %c15_i32 dim 1 : vector<8x256xf32>, i32 -> vector<8x256xf32>
    %13 = vector.extract_strided_slice %3 {offsets = [2, 0], sizes = [1, 256], strides = [1, 1]} : vector<9x256xf32> to vector<1x256xf32>
    %14 = vector.broadcast %13 : vector<1x256xf32> to vector<8x256xf32>
    %15 = arith.mulf %12, %14 : vector<8x256xf32>
    %c1_i32 = arith.constant 1 : i32
    %16 = tpu.dynamic_rotate %1 by %c1_i32 dim 1 : vector<8x256xf32>, i32 -> vector<8x256xf32>
    %17 = vector.extract_strided_slice %3 {offsets = [3, 0], sizes = [1, 256], strides = [1, 1]} : vector<9x256xf32> to vector<1x256xf32>
    %18 = vector.broadcast %17 : vector<1x256xf32> to vector<8x256xf32>
    %19 = arith.mulf %16, %18 : vector<8x256xf32>
    %c255_i32 = arith.constant 255 : i32
    %20 = tpu.dynamic_rotate %1 by %c255_i32 dim 1 : vector<8x256xf32>, i32 -> vector<8x256xf32>
    %21 = vector.extract_strided_slice %3 {offsets = [5, 0], sizes = [1, 256], strides = [1, 1]} : vector<9x256xf32> to vector<1x256xf32>
    %22 = vector.broadcast %21 : vector<1x256xf32> to vector<8x256xf32>
    %23 = arith.mulf %20, %22 : vector<8x256xf32>
    %c241_i32 = arith.constant 241 : i32
    %24 = tpu.dynamic_rotate %1 by %c241_i32 dim 1 : vector<8x256xf32>, i32 -> vector<8x256xf32>
    %25 = vector.extract_strided_slice %3 {offsets = [6, 0], sizes = [1, 256], strides = [1, 1]} : vector<9x256xf32> to vector<1x256xf32>
    %26 = vector.broadcast %25 : vector<1x256xf32> to vector<8x256xf32>
    %27 = arith.mulf %24, %26 : vector<8x256xf32>
    %c240_i32 = arith.constant 240 : i32
    %28 = tpu.dynamic_rotate %1 by %c240_i32 dim 1 : vector<8x256xf32>, i32 -> vector<8x256xf32>
    %29 = vector.extract_strided_slice %3 {offsets = [7, 0], sizes = [1, 256], strides = [1, 1]} : vector<9x256xf32> to vector<1x256xf32>
    %30 = vector.broadcast %29 : vector<1x256xf32> to vector<8x256xf32>
    %31 = arith.mulf %28, %30 : vector<8x256xf32>
    %c239_i32 = arith.constant 239 : i32
    %32 = tpu.dynamic_rotate %1 by %c239_i32 dim 1 : vector<8x256xf32>, i32 -> vector<8x256xf32>
    %33 = vector.extract_strided_slice %3 {offsets = [8, 0], sizes = [1, 256], strides = [1, 1]} : vector<9x256xf32> to vector<1x256xf32>
    %34 = vector.broadcast %33 : vector<1x256xf32> to vector<8x256xf32>
    %35 = arith.mulf %32, %34 : vector<8x256xf32>
    %36 = tpu.concatenate %7, %11, %15, %19, %1, %23, %27, %31, %35 in 0 : vector<8x256xf32>, vector<8x256xf32>, vector<8x256xf32>, vector<8x256xf32>, vector<8x256xf32>, vector<8x256xf32>, vector<8x256xf32>, vector<8x256xf32>, vector<8x256xf32> -> vector<72x256xf32>
    %cst = arith.constant dense<0.000000e+00> : vector<8x256xf32>
    %37 = tpu.matmul %2, %36, %cst {dimension_numbers = #tpu.dot_dimension_numbers<[1], [0], [0], [1], [0, 0, 1, 1], [], []>} : vector<8x72xf32>, vector<72x256xf32>, vector<8x256xf32> -> vector<8x256xf32>
    %38 = vector.shape_cast %37 : vector<8x256xf32> to vector<1x8x256xf32>
    %c0_6 = arith.constant 0 : index
    %c0_7 = arith.constant 0 : index
    %c0_8 = arith.constant 0 : index
    %39 = vector.load %arg4[%c0_6, %c0_7, %c0_8] : memref<1x8x256xf32, #tpu.memory_space<vmem>>, vector<1x8x256xf32>
    tpu.vector_store %arg4[%c0_6, %c0_7, %c0_8], %38 {strides = array<i32>} : memref<1x8x256xf32, #tpu.memory_space<vmem>>, vector<1x8x256xf32>,
    %cst_9 = arith.constant dense<0.000000e+00> : vector<8xf32>
    %40 = vector.multi_reduction <add>, %37, %cst_9 [1] : vector<8x256xf32> to vector<8xf32>
    %41 = vector.shape_cast %40 : vector<8xf32> to vector<8x1xf32>
    %42 = vector.shape_cast %41 : vector<8x1xf32> to vector<1x8x1xf32>
    %c0_10 = arith.constant 0 : index
    %c0_11 = arith.constant 0 : index
    %c0_12 = arith.constant 0 : index
    %43 = vector.load %arg5[%c0_10, %c0_11, %c0_12] : memref<1x8x1xf32, #tpu.memory_space<vmem>>, vector<1x8x1xf32>
    tpu.vector_store %arg5[%c0_10, %c0_11, %c0_12], %42 {strides = array<i32>} : memref<1x8x1xf32, #tpu.memory_space<vmem>>, vector<1x8x1xf32>,
    %44 = arith.mulf %37, %37 : vector<8x256xf32>
    %cst_13 = arith.constant dense<0.000000e+00> : vector<8xf32>
    %45 = vector.multi_reduction <add>, %44, %cst_13 [1] : vector<8x256xf32> to vector<8xf32>
    %46 = vector.shape_cast %45 : vector<8xf32> to vector<8x1xf32>
    %47 = vector.shape_cast %46 : vector<8x1xf32> to vector<1x8x1xf32>
    %c0_14 = arith.constant 0 : index
    %c0_15 = arith.constant 0 : index
    %c0_16 = arith.constant 0 : index
    %48 = vector.load %arg6[%c0_14, %c0_15, %c0_16] : memref<1x8x1xf32, #tpu.memory_space<vmem>>, vector<1x8x1xf32>
    tpu.vector_store %arg6[%c0_14, %c0_15, %c0_16], %47 {strides = array<i32>} : memref<1x8x1xf32, #tpu.memory_space<vmem>>, vector<1x8x1xf32>,
    return
  }
  func.func @transform_0(%arg0: i32) -> (i32, i32, i32) {
    %c0_i32 = arith.constant 0 : i32
    %c0_i32_0 = arith.constant 0 : i32
    %c0_i32_1 = arith.constant 0 : i32
    return %arg0, %c0_i32, %c0_i32_0 : i32, i32, i32
  }
  func.func @transform_1(%arg0: i32) -> (i32, i32) {
    %c0_i32 = arith.constant 0 : i32
    %c0_i32_0 = arith.constant 0 : i32
    %c0_i32_1 = arith.constant 0 : i32
    return %c0_i32, %c0_i32_0 : i32, i32
  }
  func.func @transform_2(%arg0: i32) -> (i32, i32) {
    %c0_i32 = arith.constant 0 : i32
    %c0_i32_0 = arith.constant 0 : i32
    %c0_i32_1 = arith.constant 0 : i32
    return %c0_i32, %c0_i32_0 : i32, i32
  }
  func.func @transform_3(%arg0: i32) -> (i32, i32, i32) {
    %c0_i32 = arith.constant 0 : i32
    %c0_i32_0 = arith.constant 0 : i32
    %c0_i32_1 = arith.constant 0 : i32
    return %arg0, %c0_i32, %c0_i32_0 : i32, i32, i32
  }
  func.func @transform_4(%arg0: i32) -> (i32, i32, i32) {
    %c0_i32 = arith.constant 0 : i32
    %c0_i32_0 = arith.constant 0 : i32
    %c0_i32_1 = arith.constant 0 : i32
    return %arg0, %c0_i32, %c0_i32_0 : i32, i32, i32
  }
  func.func @transform_5(%arg0: i32) -> (i32, i32, i32) {
    %c0_i32 = arith.constant 0 : i32
    %c0_i32_0 = arith.constant 0 : i32
    %c0_i32_1 = arith.constant 0 : i32
    return %arg0, %c0_i32, %c0_i32_0 : i32, i32, i32
  }
}

</mosaic_0001>

<llo_original>
// kernel: tpu_custom_call.1
$region0: #{tpu_custom_call.1}
  #allocation0 [shape = 'u32[]', space=smem, size = 0x4, offset = 0x4, fixed_abs, tag = 'smem constant byte address 0x4 - core index']
  #allocation1 [shape = 'u32[144,128]{1,0:T(1,128)}', space=vmem, size = 0x12000, scoped, tag = 'internal scratch']
  %s0 = inlined_call_operand.hbm [shape: f32[2,8,256], index: 0, kind: input, shape index: {}]
  %s1 = inlined_call_operand.hbm [shape: f32[8,72], index: 1, kind: input, shape index: {}]
  %s2 = inlined_call_operand.hbm [shape: f32[9,256], index: 2, kind: input, shape index: {}]
  %s3 = inlined_call_operand.hbm [shape: f32[2,8,256], index: 3, kind: output, shape index: {0}]
  %s4 = inlined_call_operand.vmem [shape: f32[2,8,1], index: 4, kind: output, shape index: {1}]
  %s5 = inlined_call_operand.vmem [shape: f32[2,8,1], index: 5, kind: output, shape index: {2}]
  %6 = xla_tuple %s3, %s4, %s5
  %s7 = sld [smem:[#allocation0]]
  $region73: #{tpu_custom_call.1} parent=0
    _
  %s9 = ssub.s32 1, %s7
  %s10 = scalar_select 0, %s9, %s7
  $region1: #{tpu_custom_call.1} parent=0
    #allocation2 [shape = 'u8[16384]{0}', space=vmem, size = 0x4000, scoped, tag = 'input window, operand 0']
    #allocation3 [shape = 's32[2]{0}', space=sflag, size = 0x8, scoped, tag = 'scoped memory for tpu_custom_call.1']
    #allocation4 [shape = 's32[2]{0}', space=sflag, size = 0x8, scoped, tag = 'scoped memory for tpu_custom_call.1']
    #allocation5 [shape = 'u8[4096]{0}', space=vmem, size = 0x1000, scoped, tag = 'input window, operand 1, single buffered']
    #allocation6 [shape = 's32[1]{0}', space=sflag, size = 0x4, scoped, tag = 'scoped memory for tpu_custom_call.1']
    #allocation7 [shape = 'u8[16384]{0}', space=vmem, size = 0x4000, scoped, tag = 'input window, operand 2, single buffered']
    #allocation8 [shape = 'u8[16384]{0}', space=vmem, size = 0x4000, scoped, tag = 'output window, operand 0']
    %11 = vsyncpa [#allocation3], 0
    %s12 = scalar_lea.sflag [#allocation3], 1
    %13 = vsyncpa %s12, 0
    %14 = vsyncpa [#allocation6], 0
    %15 = vsyncpa [#allocation4], 0
    %s16 = scalar_lea.sflag [#allocation4], 1
    %17 = vsyncpa %s16, 0
    loop: start=0, step=1, limit=4
    $region2: #{tpu_custom_call.1} parent=1 // loop_pre_header
      _
    $region3: #{tpu_custom_call.1} parent=1 // loop_header
      %s19 = sphi 0, %s23
      %p20 = scmp.ge.s32.totalorder %s19, 4
      %s29 = sphi 0, %s31
      %s32 = sphi 0, %s29
      %s33 = sphi 0, %s32
      %s49 = sphi 0, %s33
      %s53 = sphi 0, %s53
      %s55 = sphi 0, %s53
      %s56 = sphi 0, %s55
      %s70 = sphi 0, %s56
      %s74 = sphi 0, %s74
      %s76 = sphi 0, %s74
      %s77 = sphi 0, %s76
      %s91 = sphi 0, %s77
      %s97 = sphi 0, %s99
      %s100 = sphi 0, %s97
      %s101 = sphi 0, %s100
      %s117 = sphi 0, %s101
      %s123 = sphi 0, %s125
      %s126 = sphi 0, %s123
      %s127 = sphi 0, %s126
      %s143 = sphi 0, %s127
      %s149 = sphi 0, %s151
      %s152 = sphi 0, %s149
      %s153 = sphi 0, %s152
      %s169 = sphi 0, %s153
    $region4: #{tpu_custom_call.1} parent=1 // loop_header_branch
      %22 = sbr.rel (%p20) target = $region8
    $region5: #{tpu_custom_call.1} parent=1 // loop_body
      %s24 = ssub.s32 %s19, 1
      %s25 = ssub.s32 %s19, 2
      %s26 = sadd.s32 %s19, 1
      %s27 = ssub.s32 %s19, %s26
      %p28 = scmp.eq.s32.totalorder %s27, 0
      %s30 = sadd.s32 %s29, 1
      %s31 = scalar_select %p28, %s29, %s30
      %p34 = pneg %p28
      %p35 = scmp.eq.s32.totalorder %s19, 1
      %p36 = por %p34, %p35
      %p37 = scmp.ne.s32.totalorder %s29, %s32
      %p38 = scmp.eq.s32.totalorder %s19, 0
      %p39 = por %p37, %p38
      %p40 = scmp.ne.s32.totalorder %s29, %s32
      %p41 = scmp.eq.s32.totalorder %s24, 1
      %p42 = por %p40, %p41
      %p43 = scmp.ne.s32.totalorder %s32, %s33
      %p44 = scmp.eq.s32.totalorder %s24, 0
      %p45 = por %p43, %p44
      %p46 = scmp.ne.s32.totalorder %s32, %s33
      %p47 = scmp.eq.s32.totalorder %s25, 1
      %p48 = por %p46, %p47
      %p50 = scmp.ne.s32.totalorder %s33, %s49
      %p51 = scmp.eq.s32.totalorder %s25, 0
      %p52 = por %p50, %p51
      %s54 = sadd.s32 %s53, 1
      %p57 = scmp.eq.s32.totalorder %s19, 1
      %p58 = scmp.ne.s32.totalorder %s53, %s55
      %p59 = scmp.eq.s32.totalorder %s19, 0
      %p60 = por %p58, %p59
      %p61 = scmp.ne.s32.totalorder %s53, %s55
      %p62 = scmp.eq.s32.totalorder %s24, 1
      %p63 = por %p61, %p62
      %p64 = scmp.ne.s32.totalorder %s55, %s56
      %p65 = scmp.eq.s32.totalorder %s24, 0
      %p66 = por %p64, %p65
      %p67 = scmp.ne.s32.totalorder %s55, %s56
      %p68 = scmp.eq.s32.totalorder %s25, 1
      %p69 = por %p67, %p68
      %p71 = scmp.ne.s32.totalorder %s56, %s70
      %p72 = scmp.eq.s32.totalorder %s25, 0
      %p73 = por %p71, %p72
      %s75 = sadd.s32 %s74, 1
      %p78 = scmp.eq.s32.totalorder %s19, 1
      %p79 = scmp.ne.s32.totalorder %s74, %s76
      %p80 = scmp.eq.s32.totalorder %s19, 0
      %p81 = por %p79, %p80
      %p82 = scmp.ne.s32.totalorder %s74, %s76
      %p83 = scmp.eq.s32.totalorder %s24, 1
      %p84 = por %p82, %p83
      %p85 = scmp.ne.s32.totalorder %s76, %s77
      %p86 = scmp.eq.s32.totalorder %s24, 0
      %p87 = por %p85, %p86
      %p88 = scmp.ne.s32.totalorder %s76, %s77
      %p89 = scmp.eq.s32.totalorder %s25, 1
      %p90 = por %p88, %p89
      %p92 = scmp.ne.s32.totalorder %s77, %s91
      %p93 = scmp.eq.s32.totalorder %s25, 0
      %p94 = por %p92, %p93
      %s95 = ssub.s32 %s19, %s26
      %p96 = scmp.eq.s32.totalorder %s95, 0
      %s98 = sadd.s32 %s97, 1
      %s99 = scalar_select %p96, %s97, %s98
      %p102 = pneg %p96
      %p103 = scmp.eq.s32.totalorder %s19, 1
      %p104 = por %p102, %p103
      %p105 = scmp.ne.s32.totalorder %s97, %s100
      %p106 = scmp.eq.s32.totalorder %s19, 0
      %p107 = por %p105, %p106
      %p108 = scmp.ne.s32.totalorder %s97, %s100
      %p109 = scmp.eq.s32.totalorder %s24, 1
      %p110 = por %p108, %p109
      %p111 = scmp.ne.s32.totalorder %s100, %s101
      %p112 = scmp.eq.s32.totalorder %s24, 0
      %p113 = por %p111, %p112
      %p114 = scmp.ne.s32.totalorder %s100, %s101
      %p115 = scmp.eq.s32.totalorder %s25, 1
      %p116 = por %p114, %p115
      %p118 = scmp.ne.s32.totalorder %s101, %s117
      %p119 = scmp.eq.s32.totalorder %s25, 0
      %p120 = por %p118, %p119
      %s121 = ssub.s32 %s19, %s26
      %p122 = scmp.eq.s32.totalorder %s121, 0
      %s124 = sadd.s32 %s123, 1
      %s125 = scalar_select %p122, %s123, %s124
      %p128 = pneg %p122
      %p129 = scmp.eq.s32.totalorder %s19, 1
      %p130 = por %p128, %p129
      %p131 = scmp.ne.s32.totalorder %s123, %s126
      %p132 = scmp.eq.s32.totalorder %s19, 0
      %p133 = por %p131, %p132
      %p134 = scmp.ne.s32.totalorder %s123, %s126
      %p135 = scmp.eq.s32.totalorder %s24, 1
      %p136 = por %p134, %p135
      %p137 = scmp.ne.s32.totalorder %s126, %s127
      %p138 = scmp.eq.s32.totalorder %s24, 0
      %p139 = por %p137, %p138
      %p140 = scmp.ne.s32.totalorder %s126, %s127
      %p141 = scmp.eq.s32.totalorder %s25, 1
      %p142 = por %p140, %p141
      %p144 = scmp.ne.s32.totalorder %s127, %s143
      %p145 = scmp.eq.s32.totalorder %s25, 0
      %p146 = por %p144, %p145
      %s147 = ssub.s32 %s19, %s26
      %p148 = scmp.eq.s32.totalorder %s147, 0
      %s150 = sadd.s32 %s149, 1
      %s151 = scalar_select %p148, %s149, %s150
      %p154 = pneg %p148
      %p155 = scmp.eq.s32.totalorder %s19, 1
      %p156 = por %p154, %p155
      %p157 = scmp.ne.s32.totalorder %s149, %s152
      %p158 = scmp.eq.s32.totalorder %s19, 0
      %p159 = por %p157, %p158
      %p160 = scmp.ne.s32.totalorder %s149, %s152
      %p161 = scmp.eq.s32.totalorder %s24, 1
      %p162 = por %p160, %p161
      %p163 = scmp.ne.s32.totalorder %s152, %s153
      %p164 = scmp.eq.s32.totalorder %s24, 0
      %p165 = por %p163, %p164
      %p166 = scmp.ne.s32.totalorder %s152, %s153
      %p167 = scmp.eq.s32.totalorder %s25, 1
      %p168 = por %p166, %p167
      %p170 = scmp.ne.s32.totalorder %s153, %s169
      %p171 = scmp.eq.s32.totalorder %s25, 0
      %p172 = por %p170, %p171
      %p173 = scmp.le.s32.totalorder 1, %s19
      %p174 = scmp.lt.s32.totalorder %s19, 3
      %p175 = pnand %p173, %p174
      %p176 = pneg %p175
      // Predicated region
      $region9: #{tpu_custom_call.1} parent=5 // pred_check
        _
      $region10: #{tpu_custom_call.1} parent=5 // pred_check_branch
        %178 = sbr.rel (%p175) target = $region12
      $region11: #{tpu_custom_call.1} parent=5 // pred_region
        %s179 = ssub.s32 %s19, 1
        // Predicated region
        $region13: #{tpu_custom_call.1} parent=11 // pred_check
          %p180 = pneg %p66
        $region14: #{tpu_custom_call.1} parent=11 // pred_check_branch
          %182 = sbr.rel (%p180) target = $region16
        $region15: #{tpu_custom_call.1} parent=11 // pred_region
          %s184 = ssub.s32 128, 128
          %185 = vsyncadd [#allocation6], %s184
          %s187 = sshll.u32 [#allocation5], 4
          %s188 = int_to_ptr.vmem [resolvable:$true] %s187
          %190 = dma.hbm_to_vmem [thread:$0]  %s1, 128, %s188, [#allocation6]
        $region16: #{tpu_custom_call.1} parent=11 // pred_fallthru
          _
        // Predicated region
        $region17: #{tpu_custom_call.1} parent=11 // pred_check
          %p191 = pneg %p87
        $region18: #{tpu_custom_call.1} parent=11 // pred_check_branch
          %193 = sbr.rel (%p191) target = $region20
        $region19: #{tpu_custom_call.1} parent=11 // pred_region
          %s195 = ssub.s32 512, 512
          %196 = vsyncadd [#allocation6], %s195
          %s197 = sshll.u32 [#allocation7], 4
          %s198 = int_to_ptr.vmem [resolvable:$true] %s197
          %203 = dma.hbm_to_vmem [thread:$0]  %s2, 512, %s198, [#allocation6], 256, 256, 16
        $region20: #{tpu_custom_call.1} parent=11 // pred_fallthru
          _
      $region12: #{tpu_custom_call.1} parent=5 // pred_fallthru
        _
      %p204 = scmp.lt.s32.totalorder %s19, 2
      // Predicated region
      $region21: #{tpu_custom_call.1} parent=5 // pred_check
        %p205 = pneg %p204
      $region22: #{tpu_custom_call.1} parent=5 // pred_check_branch
        %207 = sbr.rel (%p205) target = $region24
      $region23: #{tpu_custom_call.1} parent=5 // pred_region
        // Predicated region
        $region25: #{tpu_custom_call.1} parent=23 // pred_check
          %p208 = pneg %p39
        $region26: #{tpu_custom_call.1} parent=23 // pred_check_branch
          %210 = sbr.rel (%p208) target = $region28
        $region27: #{tpu_custom_call.1} parent=23 // pred_region
          %s211 = sand.u32 %s29, 1
          %s212 = scalar_lea.sflag [#allocation3], %s211
          %s213 = sand.u32 %s29, 1
          %s214 = smul.addr %s213, 16
          %s215 = scalar_lea.vmem [#allocation2], %s214
          %s217 = ssub.s32 256, 256
          %218 = vsyncadd %s212, %s217
          %s219 = smul.addr %s19, 2
          %s220 = smul.addr %s219, 128
          %s221 = scalar_lea.hbm %s0, %s220
          %s223 = sshll.u32 %s215, 4
          %s224 = int_to_ptr.vmem [resolvable:$true] %s223
          %226 = dma.hbm_to_vmem [thread:$0]  %s221, 256, %s224, %s212
        $region28: #{tpu_custom_call.1} parent=23 // pred_fallthru
          _
      $region24: #{tpu_custom_call.1} parent=5 // pred_fallthru
        _
      %p227 = scmp.le.s32.totalorder 1, %s19
      %p228 = scmp.lt.s32.totalorder %s19, 3
      %p229 = pnand %p227, %p228
      %p230 = pneg %p229
      // Predicated region
      $region29: #{tpu_custom_call.1} parent=5 // pred_check
        _
      $region30: #{tpu_custom_call.1} parent=5 // pred_check_branch
        %232 = sbr.rel (%p229) target = $region32
      $region31: #{tpu_custom_call.1} parent=5 // pred_region
        %s233 = ssub.s32 %s19, 1
        %s234 = sand.u32 %s32, 1
        %s235 = scalar_lea.sflag [#allocation3], %s234
        %s236 = sand.u32 %s32, 1
        %s237 = smul.addr %s236, 16
        %s238 = scalar_lea.vmem [#allocation2], %s237
        // Predicated region
        $region33: #{tpu_custom_call.1} parent=31 // pred_check
          %p239 = pneg %p45
        $region34: #{tpu_custom_call.1} parent=31 // pred_check_branch
          %241 = sbr.rel (%p239) target = $region36
        $region35: #{tpu_custom_call.1} parent=31 // pred_region
          %242 = dma.done %s235, 256
        $region36: #{tpu_custom_call.1} parent=31 // pred_fallthru
          _
        // Predicated region
        $region37: #{tpu_custom_call.1} parent=31 // pred_check
          %p243 = pneg %p66
        $region38: #{tpu_custom_call.1} parent=31 // pred_check_branch
          %245 = sbr.rel (%p243) target = $region40
        $region39: #{tpu_custom_call.1} parent=31 // pred_region
          %246 = dma.done [#allocation6], 128
        $region40: #{tpu_custom_call.1} parent=31 // pred_fallthru
          _
        // Predicated region
        $region41: #{tpu_custom_call.1} parent=31 // pred_check
          %p247 = pneg %p87
        $region42: #{tpu_custom_call.1} parent=31 // pred_check_branch
          %249 = sbr.rel (%p247) target = $region44
        $region43: #{tpu_custom_call.1} parent=31 // pred_region
          %250 = dma.done [#allocation6], 512
        $region44: #{tpu_custom_call.1} parent=31 // pred_fallthru
          _
        %s251 = sand.u32 %s32, 1
        %s252 = scalar_lea.sflag [#allocation3], %s251
        %s253 = sand.u32 %s32, 1
        %s254 = smul.addr %s253, 16
        %s255 = scalar_lea.vmem [#allocation2], %s254
        %p256 = pneg %p45
        %p257 = pneg %p42
        %p258 = pneg %p66
        %p259 = pneg %p63
        %p260 = pneg %p87
        %p261 = pneg %p84
        %p262 = pneg %p113
        %p263 = pneg %p110
        %s264 = sand.u32 %s100, 1
        %s265 = scalar_lea.sflag [#allocation4], %s264
        %s266 = sand.u32 %s100, 1
        %s267 = smul.addr %s266, 16
        %s268 = scalar_lea.vmem [#allocation8], %s267
        %p269 = pneg %p139
        %p270 = pneg %p136
        %p271 = scmp.lt.s32.totalorder %s24, 1
        %s272 = scalar_select %p271, %s24, 1
        %s273 = smul.addr %s272, 8
        %s274 = scalar_lea.vmem %s4, %s273
        %p275 = pneg %p165
        %p276 = pneg %p162
        %p277 = scmp.lt.s32.totalorder %s24, 1
        %s278 = scalar_select %p277, %s24, 1
        %s279 = smul.addr %s278, 8
        %s280 = scalar_lea.vmem %s5, %s279
        %p281 = scmp.lt.s32.totalorder %s24, 1
        %s282 = scalar_select %p281, %s24, 1
        %s283 = smul.addr %s282, 8
        %s284 = scalar_lea.vmem %s4, %s283
        %p285 = scmp.lt.s32.totalorder %s24, 1
        %s286 = scalar_select %p285, %s24, 1
        %s287 = smul.addr %s286, 8
        %s288 = scalar_lea.vmem %s5, %s287
        %v289 = vld [vmem:[%s238] sm:$0xff]
        %v290 = vld [vmem:[%s238 + $0x8] sm:$0xff]
        %v291 = vld [vmem:[#allocation5] sm:$0xff]
        %v292 = vld [vmem:[#allocation7] sm:$0xff]
        %v293 = vld [vmem:[#allocation7 + $0x8] sm:$0xff]
        %v294 = vld [vmem:[#allocation7 + $0x10] sm:$0x1]
        %v295 = vld [vmem:[#allocation7 + $0x18] sm:$0x1]
        %296 = vrot.lane.b32.xlu0 %v289, 17
        %v297 = vpop.permute.xlu0 %296
        %298 = vrot.lane.b32.xlu0 %v290, 17
        %v299 = vpop.permute.xlu0 %298
        %v300 = vlaneseq
        %v301 = vand.u32 %v300, 127
        %vm302 = vcmp.lt.s32.totalorder %v301, 17
        %v303 = vsel %vm302, %v297, %v299
        %v304 = vsel %vm302, %v299, %v297
        %v305 = vlaneseq
        %v306 = vshrl.u32 %v305, 7
        %v307 = vsub.s32 0, %v306
        %v308 = vrot.slane %v292, %v307
        %v309 = vlaneseq
        %v310 = vshrl.u32 %v309, 7
        %v311 = vsub.s32 0, %v310
        %v312 = vrot.slane %v293, %v311
        %v313 = vmul.f32 %v304, %v308
        %v314 = vmul.f32 %v303, %v312
        %315 = vrot.lane.b32.xlu0 %v289, 16
        %v316 = vpop.permute.xlu0 %315
        %317 = vrot.lane.b32.xlu0 %v290, 16
        %v318 = vpop.permute.xlu0 %317
        %vm319 = vcmp.lt.s32.totalorder %v301, 16
        %v320 = vsel %vm319, %v316, %v318
        %v321 = vsel %vm319, %v318, %v316
        %v322 = vlaneseq
        %v323 = vshrl.u32 %v322, 7
        %v324 = vsub.s32 1, %v323
        %v325 = vrot.slane %v292, %v324
        %v326 = vlaneseq
        %v327 = vshrl.u32 %v326, 7
        %v328 = vsub.s32 1, %v327
        %v329 = vrot.slane %v293, %v328
        %v330 = vmul.f32 %v321, %v325
        %v331 = vmul.f32 %v320, %v329
        %332 = vrot.lane.b32.xlu0 %v289, 15
        %v333 = vpop.permute.xlu0 %332
        %334 = vrot.lane.b32.xlu0 %v290, 15
        %v335 = vpop.permute.xlu0 %334
        %vm336 = vcmp.lt.s32.totalorder %v301, 15
        %v337 = vsel %vm336, %v333, %v335
        %v338 = vsel %vm336, %v335, %v333
        %v339 = vlaneseq
        %v340 = vshrl.u32 %v339, 7
        %v341 = vsub.s32 2, %v340
        %v342 = vrot.slane %v292, %v341
        %v343 = vlaneseq
        %v344 = vshrl.u32 %v343, 7
        %v345 = vsub.s32 2, %v344
        %v346 = vrot.slane %v293, %v345
        %v347 = vmul.f32 %v338, %v342
        %v348 = vmul.f32 %v337, %v346
        %349 = vrot.lane.b32.xlu0 %v289, 1
        %v350 = vpop.permute.xlu0 %349
        %351 = vrot.lane.b32.xlu0 %v290, 1
        %v352 = vpop.permute.xlu0 %351
        %vm353 = vcmp.lt.s32.totalorder %v301, 1
        %v354 = vsel %vm353, %v350, %v352
        %v355 = vsel %vm353, %v352, %v350
        %v356 = vlaneseq
        %v357 = vshrl.u32 %v356, 7
        %v358 = vsub.s32 3, %v357
        %v359 = vrot.slane %v292, %v358
        %v360 = vlaneseq
        %v361 = vshrl.u32 %v360, 7
        %v362 = vsub.s32 3, %v361
        %v363 = vrot.slane %v293, %v362
        %v364 = vmul.f32 %v355, %v359
        %v365 = vmul.f32 %v354, %v363
        %366 = vrot.lane.b32.xlu0 %v289, 127
        %v367 = vpop.permute.xlu0 %366
        %368 = vrot.lane.b32.xlu0 %v290, 127
        %v369 = vpop.permute.xlu0 %368
        %vm370 = vcmp.lt.s32.totalorder %v301, 127
        %v371 = vsel %vm370, %v367, %v369
        %v372 = vsel %vm370, %v369, %v367
        %v373 = vlaneseq
        %v374 = vshrl.u32 %v373, 7
        %v375 = vsub.s32 5, %v374
        %v376 = vrot.slane %v292, %v375
        %v377 = vlaneseq
        %v378 = vshrl.u32 %v377, 7
        %v379 = vsub.s32 5, %v378
        %v380 = vrot.slane %v293, %v379
        %v381 = vmul.f32 %v371, %v376
        %v382 = vmul.f32 %v372, %v380
        %383 = vrot.lane.b32.xlu0 %v289, 113
        %v384 = vpop.permute.xlu0 %383
        %385 = vrot.lane.b32.xlu0 %v290, 113
        %v386 = vpop.permute.xlu0 %385
        %vm387 = vcmp.lt.s32.totalorder %v301, 113
        %v388 = vsel %vm387, %v384, %v386
        %v389 = vsel %vm387, %v386, %v384
        %v390 = vlaneseq
        %v391 = vshrl.u32 %v390, 7
        %v392 = vsub.s32 6, %v391
        %v393 = vrot.slane %v292, %v392
        %v394 = vlaneseq
        %v395 = vshrl.u32 %v394, 7
        %v396 = vsub.s32 6, %v395
        %v397 = vrot.slane %v293, %v396
        %v398 = vmul.f32 %v388, %v393
        %v399 = vmul.f32 %v389, %v397
        %400 = vrot.lane.b32.xlu0 %v289, 112
        %v401 = vpop.permute.xlu0 %400
        %402 = vrot.lane.b32.xlu0 %v290, 112
        %v403 = vpop.permute.xlu0 %402
        %vm404 = vcmp.lt.s32.totalorder %v301, 112
        %v405 = vsel %vm404, %v401, %v403
        %v406 = vsel %vm404, %v403, %v401
        %v407 = vlaneseq
        %v408 = vshrl.u32 %v407, 7
        %v409 = vsub.s32 7, %v408
        %v410 = vrot.slane %v292, %v409
        %v411 = vlaneseq
        %v412 = vshrl.u32 %v411, 7
        %v413 = vsub.s32 7, %v412
        %v414 = vrot.slane %v293, %v413
        %v415 = vmul.f32 %v405, %v410
        %v416 = vmul.f32 %v406, %v414
        %417 = vrot.lane.b32.xlu0 %v289, 111
        %v418 = vpop.permute.xlu0 %417
        %419 = vrot.lane.b32.xlu0 %v290, 111
        %v420 = vpop.permute.xlu0 %419
        %vm421 = vcmp.lt.s32.totalorder %v301, 111
        %v422 = vsel %vm421, %v418, %v420
        %v423 = vsel %vm421, %v420, %v418
        %v424 = vlaneseq
        %v425 = vshrl.u32 %v424, 7
        %v426 = vsub.s32 0, %v425
        %v427 = vrot.slane %v294, %v426
        %v428 = vlaneseq
        %v429 = vshrl.u32 %v428, 7
        %v430 = vsub.s32 0, %v429
        %v431 = vrot.slane %v295, %v430
        %v432 = vmul.f32 %v422, %v427
        %v433 = vmul.f32 %v423, %v431
        %vm434 = vcmask 588800
        %v436 = vsel %vm434, %v291, 0
        %438 = vmatprep.subr.mxu0 0.0
        %439 = vmatpush1.msra.mxu0 0.0
        %440 = vmatprep.subr.mxu0 0.0
        %441 = vmatpush1.msra.mxu0 0.0
        %442 = vmatprep.subr.mxu0 0.0
        %443 = vmatpush1.msra.mxu0 0.0
        %444 = vmatprep.subr.mxu0 0.0
        %445 = vmatpush1.msra.mxu0 0.0
        %446 = vmatprep.subr.mxu0 0.0
        %447 = vmatpush1.msra.mxu0 0.0
        %448 = vmatprep.subr.mxu0 0.0
        %449 = vmatpush1.msra.mxu0 0.0
        %450 = vmatprep.subr.mxu0 0.0
        %451 = vmatpush1.msra.mxu0 0.0
        %452 = vmatprep.subr.mxu0 %v433
        %453 = vmatpush1.msra.mxu0 %v432
        %454 = vmatprep.subr.mxu0 %v416
        %455 = vmatpush1.msra.mxu0 %v415
        %456 = vmatprep.subr.mxu0 %v399
        %457 = vmatpush1.msra.mxu0 %v398
        %458 = vmatprep.subr.mxu0 %v382
        %459 = vmatpush1.msra.mxu0 %v381
        %460 = vmatprep.subr.mxu0 %v290
        %461 = vmatpush1.msra.mxu0 %v289
        %462 = vmatprep.subr.mxu0 %v365
        %463 = vmatpush1.msra.mxu0 %v364
        %464 = vmatprep.subr.mxu0 %v348
        %465 = vmatpush1.msra.mxu0 %v347
        %466 = vmatprep.subr.mxu0 %v331
        %467 = vmatpush1.msra.mxu0 %v330
        %468 = vmatprep.subr.mxu0 %v314
        %469 = vmatpush1.msra.mxu0 %v313
        %470 = vmatprep.subr.mxu0 0.0
        %471 = vmatpush2.msra.mxu0 0.0
        %472 = vmatprep.subr.mxu0 0.0
        %473 = vmatpush2.msra.mxu0 0.0
        %474 = vmatprep.subr.mxu0 0.0
        %475 = vmatpush2.msra.mxu0 0.0
        %476 = vmatprep.subr.mxu0 0.0
        %477 = vmatpush2.msra.mxu0 0.0
        %478 = vmatprep.subr.mxu0 0.0
        %479 = vmatpush2.msra.mxu0 0.0
        %480 = vmatprep.subr.mxu0 0.0
        %481 = vmatpush2.msra.mxu0 0.0
        %482 = vmatprep.subr.mxu0 0.0
        %483 = vmatpush2.msra.mxu0 0.0
        %484 = vmatprep.subr.mxu0 0.0
        %485 = vmatpush2.msra.mxu0 0.0
        %486 = vmatprep.subr.mxu0 0.0
        %487 = vmatpush2.msra.mxu0 0.0
        %488 = vmatprep.subr.mxu0 0.0
        %489 = vmatpush2.msra.mxu0 0.0
        %490 = vmatprep.subr.mxu0 0.0
        %491 = vmatpush2.msra.mxu0 0.0
        %492 = vmatprep.subr.mxu0 0.0
        %493 = vmatpush2.msra.mxu0 0.0
        %494 = vmatprep.subr.mxu0 0.0
        %495 = vmatpush2.msra.mxu0 0.0
        %496 = vmatprep.subr.mxu0 0.0
        %497 = vmatpush2.msra.mxu0 0.0
        %498 = vmatprep.subr.mxu0 0.0
        %499 = vmatpush2.msra.mxu0 0.0
        %500 = vmatprep.subr.mxu0 0.0
        %501 = vmatpush2.msra.mxu0 0.0
        %502 = vmatprep.mubr.f32.mxu0 0.0
        %503 = vmatmul.mubr.f32.gmra.mxu0 %v436
        %v504 = vpop.f32.mrf.mxu0
        %v505 = vadd.f32 0.0, %v504
        %v506 = vpop.f32.mrf.mxu0
        %v507 = vadd.f32 0.0, %v506
        %508 = vdwg.mxu0
        %509 = vst [vmem:[%s268] sm:$0xff] %v505
        %510 = vst [vmem:[%s268 + $0x8] sm:$0xff] %v507
        %v511 = vadd.f32 %v505, %v507
        %512 = vadd.xlane.f32.xlu0 %v511
        %v513 = vpop.xlane.xlu0 %512
        %vm514 = vcmask 7168
        %515 = vst.msk [vmem:[%s284] sm:$0xff] %vm514, %v513
        %v516 = vmul.f32 %v505, %v505
        %v517 = vmul.f32 %v507, %v507
        %v518 = vadd.f32 %v516, %v517
        %519 = vadd.xlane.f32.xlu0 %v518
        %v520 = vpop.xlane.xlu0 %519
        %521 = vst.msk [vmem:[%s288] sm:$0xff] %vm514, %v520
        %s522 = sand.u32 %s100, 1
        %s523 = scalar_lea.sflag [#allocation4], %s522
        %s524 = sand.u32 %s100, 1
        %s525 = smul.addr %s524, 16
        %s526 = scalar_lea.vmem [#allocation8], %s525
        %p527 = scmp.lt.s32.totalorder %s24, 1
        %s528 = scalar_select %p527, %s24, 1
        %s529 = smul.addr %s528, 8
        %s530 = scalar_lea.vmem %s4, %s529
        %p531 = scmp.lt.s32.totalorder %s24, 1
        %s532 = scalar_select %p531, %s24, 1
        %s533 = smul.addr %s532, 8
        %s534 = scalar_lea.vmem %s5, %s533
        // Predicated region
        $region45: #{tpu_custom_call.1} parent=31 // pred_check
          %p535 = pneg %p110
        $region46: #{tpu_custom_call.1} parent=31 // pred_check_branch
          %537 = sbr.rel (%p535) target = $region48
        $region47: #{tpu_custom_call.1} parent=31 // pred_region
          %s539 = ssub.s32 256, 256
          %540 = vsyncadd %s523, %s539
          %s541 = smul.addr %s24, 2
          %s542 = smul.addr %s541, 128
          %s543 = scalar_lea.hbm %s3, %s542
          %s545 = sshll.u32 %s526, 4
          %s546 = int_to_ptr.vmem [resolvable:$true] %s545
          %548 = dma.vmem_to_hbm [thread:$0]  %s546, 256, %s543, %s523
        $region48: #{tpu_custom_call.1} parent=31 // pred_fallthru
          _
        // Predicated region
        $region49: #{tpu_custom_call.1} parent=31 // pred_check
          %p549 = pneg %p136
        $region50: #{tpu_custom_call.1} parent=31 // pred_check_branch
          %551 = sbr.rel (%p549) target = $region52
        $region51: #{tpu_custom_call.1} parent=31 // pred_region
          _
        $region52: #{tpu_custom_call.1} parent=31 // pred_fallthru
          _
        // Predicated region
        $region53: #{tpu_custom_call.1} parent=31 // pred_check
          %p552 = pneg %p162
        $region54: #{tpu_custom_call.1} parent=31 // pred_check_branch
          %554 = sbr.rel (%p552) target = $region56
        $region55: #{tpu_custom_call.1} parent=31 // pred_region
          _
        $region56: #{tpu_custom_call.1} parent=31 // pred_fallthru
          _
      $region32: #{tpu_custom_call.1} parent=5 // pred_fallthru
        _
      %p555 = scmp.le.s32.totalorder 2, %s19
      // Predicated region
      $region57: #{tpu_custom_call.1} parent=5 // pred_check
        %p556 = pneg %p555
      $region58: #{tpu_custom_call.1} parent=5 // pred_check_branch
        %558 = sbr.rel (%p556) target = $region60
      $region59: #{tpu_custom_call.1} parent=5 // pred_region
        %s559 = ssub.s32 %s19, 2
        // Predicated region
        $region61: #{tpu_custom_call.1} parent=59 // pred_check
          %p560 = pneg %p116
        $region62: #{tpu_custom_call.1} parent=59 // pred_check_branch
          %562 = sbr.rel (%p560) target = $region64
        $region63: #{tpu_custom_call.1} parent=59 // pred_region
          %s563 = sand.u32 %s101, 1
          %s564 = scalar_lea.sflag [#allocation4], %s563
          %s565 = sand.u32 %s101, 1
          %s566 = smul.addr %s565, 16
          %s567 = scalar_lea.vmem [#allocation8], %s566
          %568 = dma.done %s564, 256
        $region64: #{tpu_custom_call.1} parent=59 // pred_fallthru
          _
        // Predicated region
        $region65: #{tpu_custom_call.1} parent=59 // pred_check
          %p569 = pneg %p142
        $region66: #{tpu_custom_call.1} parent=59 // pred_check_branch
          %571 = sbr.rel (%p569) target = $region68
        $region67: #{tpu_custom_call.1} parent=59 // pred_region
          %p572 = scmp.lt.s32.totalorder %s25, 1
          %s573 = scalar_select %p572, %s25, 1
          %s574 = smul.addr %s573, 8
          %s575 = scalar_lea.vmem %s4, %s574
        $region68: #{tpu_custom_call.1} parent=59 // pred_fallthru
          _
        // Predicated region
        $region69: #{tpu_custom_call.1} parent=59 // pred_check
          %p576 = pneg %p168
        $region70: #{tpu_custom_call.1} parent=59 // pred_check_branch
          %578 = sbr.rel (%p576) target = $region72
        $region71: #{tpu_custom_call.1} parent=59 // pred_region
          %p579 = scmp.lt.s32.totalorder %s25, 1
          %s580 = scalar_select %p579, %s25, 1
          %s581 = smul.addr %s580, 8
          %s582 = scalar_lea.vmem %s5, %s581
        $region72: #{tpu_custom_call.1} parent=59 // pred_fallthru
          _
      $region60: #{tpu_custom_call.1} parent=5 // pred_fallthru
        _
    $region6: #{tpu_custom_call.1} parent=1 // loop_footer
      %s23 = sadd.s32 1, %s19
    $region7: #{tpu_custom_call.1} parent=1 // loop_footer_branch
      %18 = sbr.rel target = $region3
    $region8: #{tpu_custom_call.1} parent=1 // loop_exit
      _
    %583 = vsyncpa [#allocation3], 1
    %s584 = scalar_lea.sflag [#allocation3], 1
    %585 = vsyncpa %s584, 1
    %586 = vsyncpa [#allocation6], 1
    %587 = vsyncpa [#allocation4], 1
    %s588 = scalar_lea.sflag [#allocation4], 1
    %589 = vsyncpa %s588, 1

</llo_original>
